<compile_context>
chip_gen: v5e
topology: v5e:2x2
jax: 0.10.0
libtpu: 0.0.40
codegen_flags: <defaults>
</compile_context>

<pallas_src>
import functools

import jax
import jax.numpy as jnp
from jax import lax
from jax.experimental import pallas as pl
from jax.experimental.pallas import tpu as pltpu

EPS = 1e-5                       # torch.nn.LayerNorm default eps
VMEM_LIMIT = 48 * 1024 * 1024    # raised scoped-VMEM limit (fits v5e/v6e/v7x)


# ----------------------------------------------------------------------------
# helpers
# ----------------------------------------------------------------------------
def _ln(x, g, b):
    mu = jnp.mean(x, axis=-1, keepdims=True)
    var = jnp.mean((x - mu) ** 2, axis=-1, keepdims=True)
    return (x - mu) * lax.rsqrt(var + EPS) * g + b


def _bcast_spec(shape):
    """Whole-array block that stays at block index 0 for every grid step
    (weights / small params stay resident in VMEM across the grid)."""
    n = len(shape)
    return pl.BlockSpec(shape, lambda *args, _n=n: (0,) * _n)


def _row_tile(total, cap=512):
    """Largest row tile <= cap that divides `total` and keeps the (8,128)
    block constraint; falls back to a single full block."""
    if total <= cap:
        return total
    t = cap - (cap % 8)
    while t >= 8:
        if total % t == 0:
            return t
        t -= 8
    return total


# ----------------------------------------------------------------------------
# Pallas kernels
# ----------------------------------------------------------------------------
def _embed_kernel(x_ref, g1_ref, b1_ref, w_ref, b_ref, g2_ref, b2_ref, o_ref):
    # patch_to_emb: LayerNorm -> Linear -> LayerNorm (fused, row tile)
    x = _ln(x_ref[...], g1_ref[...], b1_ref[...])
    y = jnp.dot(x.astype(jnp.bfloat16), w_ref[...],
                preferred_element_type=jnp.float32) + b_ref[...]
    o_ref[...] = _ln(y, g2_ref[...], b2_ref[...])


def _mask_kernel(tok_ref, pos_ref, mt_ref, mask_ref, o_ref):
    # tokens+pos vs mask_token+pos selected by an int mask; all broadcasts
    # happen in-register (no HBM-materialized broadcasts).
    pos = pos_ref[0]                       # (N, D)
    tok = tok_ref[0] + pos                 # (N, D)
    mtk = mt_ref[...] + pos                # (1, D) + (N, D) -> (N, D)
    o_ref[0] = jnp.where(mask_ref[0] > 0, mtk, tok)


def _attn_block_kernel(x_ref, g_ref, b_ref, wqkv_ref, wo_ref, bo_ref, o_ref,
                       *, heads, dim_head, scale):
    # Fused transformer attention block for one batch element:
    # pre-LN -> QKV -> per-head attention -> out-proj -> residual add.
    x = x_ref[0]                                              # (N, D) f32
    xn = _ln(x, g_ref[...], b_ref[...])
    qkv = jnp.dot(xn.astype(jnp.bfloat16), wqkv_ref[...],
                  preferred_element_type=jnp.float32)         # (N, 3*inner)
    inner = heads * dim_head
    acc = jnp.zeros(x.shape, jnp.float32)
    for h in range(heads):                                    # static unroll
        q = qkv[:, h * dim_head:(h + 1) * dim_head].astype(jnp.bfloat16)
        k = qkv[:, inner + h * dim_head:
                   inner + (h + 1) * dim_head].astype(jnp.bfloat16)
        v = qkv[:, 2 * inner + h * dim_head:
                   2 * inner + (h + 1) * dim_head].astype(jnp.bfloat16)
        # contract last dims of both operands (no explicit k.T transpose)
        s = lax.dot_general(q, k, (((1,), (1,)), ((), ())),
                            preferred_element_type=jnp.float32) * scale
        s = s - jnp.max(s, axis=-1, keepdims=True)
        e = jnp.exp(s)
        p = e * pl.reciprocal(jnp.sum(e, axis=-1, keepdims=True), approx=True)
        o_h = jnp.dot(p.astype(jnp.bfloat16), v,
                      preferred_element_type=jnp.float32)     # (N, dh)
        # fold per-head slice of the output projection (== concat @ w_o)
        w_o_h = wo_ref[pl.ds(h * dim_head, dim_head), :]      # (dh, D) bf16
        acc = acc + jnp.dot(o_h.astype(jnp.bfloat16), w_o_h,
                            preferred_element_type=jnp.float32)
    o_ref[0] = x + acc + bo_ref[...]                          # fused residual


def _ff_kernel(x_ref, g_ref, b_ref, w1_ref, b1_ref, w2_ref, b2_ref, o_ref):
    # FeedForward: LayerNorm -> Linear -> GELU -> Linear -> residual add
    x = x_ref[...]
    xn = _ln(x, g_ref[...], b_ref[...])
    h = jnp.dot(xn.astype(jnp.bfloat16), w1_ref[...],
                preferred_element_type=jnp.float32) + b1_ref[...]
    # TODO(synk): nn.GELU default is exact erf-GELU; tanh approximation kept
    # here for robust/EUP-friendly TPU lowering (small numerical mismatch).
    h = jax.nn.gelu(h, approximate=True)
    y = jnp.dot(h.astype(jnp.bfloat16), w2_ref[...],
                preferred_element_type=jnp.float32) + b2_ref[...]
    o_ref[...] = x + y                                        # fused residual


def _layernorm_kernel(x_ref, g_ref, b_ref, o_ref):
    o_ref[...] = _ln(x_ref[...], g_ref[...], b_ref[...])


def _pred_loss_kernel(x_ref, w_ref, b_ref, t_ref, o_ref, acc_ref):
    # to_pixels projection + running |pred - target| sum, finalized on the
    # last grid step.
    @pl.when(pl.program_id(0) == 0)
    def _():
        acc_ref[...] = jnp.zeros_like(acc_ref)

    pred = jnp.dot(x_ref[...].astype(jnp.bfloat16), w_ref[...],
                   preferred_element_type=jnp.float32) + b_ref[...]
    acc_ref[...] = acc_ref[...] + jnp.sum(jnp.abs(pred - t_ref[...]))

    @pl.when(pl.program_id(0) == pl.num_programs(0) - 1)
    def _():
        o_ref[...] = acc_ref[...]


# ----------------------------------------------------------------------------
# Pallas wrappers
# ----------------------------------------------------------------------------
def patch_to_emb(x, params):
    rows, pdim = x.shape
    dim = params["emb_w"].shape[1]
    tile = _row_tile(rows)
    args = (x, params["emb_ln1_g"], params["emb_ln1_b"], params["emb_w"],
            params["emb_b"], params["emb_ln2_g"], params["emb_ln2_b"])
    return pl.pallas_call(
        _embed_kernel,
        out_shape=jax.ShapeDtypeStruct((rows, dim), jnp.float32),
        grid=(rows // tile,),
        in_specs=[pl.BlockSpec((tile, pdim), lambda i: (i, 0))]
                 + [_bcast_spec(a.shape) for a in args[1:]],
        out_specs=pl.BlockSpec((tile, dim), lambda i: (i, 0)),
        compiler_params=pltpu.CompilerParams(
            dimension_semantics=("parallel",), vmem_limit_bytes=VMEM_LIMIT),
    )(*args)


def add_pos_and_mask(tokens, pos_emb, mask_token, int_mask):
    B, N, D = tokens.shape
    mt = mask_token.reshape(1, D)
    mask = int_mask[:, :, None]                               # (B, N, 1) int32
    tok_spec = pl.BlockSpec((1, N, D), lambda b: (b, 0, 0))
    return pl.pallas_call(
        _mask_kernel,
        out_shape=jax.ShapeDtypeStruct((B, N, D), jnp.float32),
        grid=(B,),
        in_specs=[tok_spec, _bcast_spec(pos_emb.shape), _bcast_spec(mt.shape),
                  pl.BlockSpec((1, N, 1), lambda b: (b, 0, 0))],
        out_specs=tok_spec,
        compiler_params=pltpu.CompilerParams(
            dimension_semantics=("parallel",)),
    )(tokens, pos_emb, mt, mask)


def attention_block(x, lp, *, heads, dim_head):
    B, N, D = x.shape
    kernel = functools.partial(_attn_block_kernel, heads=heads,
                               dim_head=dim_head, scale=dim_head ** -0.5)
    x_spec = pl.BlockSpec((1, N, D), lambda b: (b, 0, 0))
    args = (x, lp["attn_ln_g"], lp["attn_ln_b"], lp["w_qkv"],
            lp["w_o"], lp["b_o"])
    return pl.pallas_call(
        kernel,
        out_shape=jax.ShapeDtypeStruct((B, N, D), jnp.float32),
        grid=(B,),
        in_specs=[x_spec] + [_bcast_spec(a.shape) for a in args[1:]],
        out_specs=x_spec,
        compiler_params=pltpu.CompilerParams(
            dimension_semantics=("parallel",), vmem_limit_bytes=VMEM_LIMIT),
    )(*args)


def feedforward_block(x, lp):
    B, N, D = x.shape
    rows = B * N
    tile = _row_tile(rows)
    args = (x.reshape(rows, D), lp["ff_ln_g"], lp["ff_ln_b"],
            lp["w1"], lp["b1"], lp["w2"], lp["b2"])
    out = pl.pallas_call(
        _ff_kernel,
        out_shape=jax.ShapeDtypeStruct((rows, D), jnp.float32),
        grid=(rows // tile,),
        in_specs=[pl.BlockSpec((tile, D), lambda i: (i, 0))]
                 + [_bcast_spec(a.shape) for a in args[1:]],
        out_specs=pl.BlockSpec((tile, D), lambda i: (i, 0)),
        compiler_params=pltpu.CompilerParams(
            dimension_semantics=("parallel",), vmem_limit_bytes=VMEM_LIMIT),
    )(*args)
    return out.reshape(B, N, D)


def layernorm_rows(x, g, b):
    rows, D = x.shape
    tile = _row_tile(rows)
    return pl.pallas_call(
        _layernorm_kernel,
        out_shape=jax.ShapeDtypeStruct((rows, D), jnp.float32),
        grid=(rows // tile,),
        in_specs=[pl.BlockSpec((tile, D), lambda i: (i, 0)),
                  _bcast_spec(g.shape), _bcast_spec(b.shape)],
        out_specs=pl.BlockSpec((tile, D), lambda i: (i, 0)),
        compiler_params=pltpu.CompilerParams(
            dimension_semantics=("parallel",)),
    )(x, g, b)


def pred_l1_sum(x, w, b, target):
    rows, D = x.shape
    pdim = w.shape[1]
    tile = _row_tile(rows)
    out = pl.pallas_call(
        _pred_loss_kernel,
        out_shape=jax.ShapeDtypeStruct((1, 1), jnp.float32),
        grid=(rows // tile,),
        in_specs=[pl.BlockSpec((tile, D), lambda i: (i, 0)),
                  _bcast_spec(w.shape), _bcast_spec(b.shape),
                  pl.BlockSpec((tile, pdim), lambda i: (i, 0))],
        out_specs=pl.BlockSpec((1, 1), lambda i: (0, 0)),
        scratch_shapes=[pltpu.VMEM((1, 1), jnp.float32)],
        compiler_params=pltpu.CompilerParams(
            dimension_semantics=("arbitrary",), vmem_limit_bytes=VMEM_LIMIT),
    )(x, w, b, target)
    return out[0, 0]


# ----------------------------------------------------------------------------
# parameters (deterministic synthetic init; matmul weights stored in bf16)
# ----------------------------------------------------------------------------
def init_params(key, *, patch_dim, dim, depth, heads, dim_head, mlp_dim,
                num_patches):
    def init(k, shape, dtype=jnp.bfloat16):
        return (0.02 * jax.random.normal(k, shape, jnp.float32)).astype(dtype)

    keys = iter(jax.random.split(key, 8 + depth * 6))
    inner = heads * dim_head
    ones = lambda n: jnp.ones((1, n), jnp.float32)
    zeros = lambda n: jnp.zeros((1, n), jnp.float32)

    params = dict(
        pos_embedding=init(next(keys), (1, num_patches + 1, dim), jnp.float32),
        mask_token=jax.random.normal(next(keys), (dim,), jnp.float32),
        emb_ln1_g=ones(patch_dim), emb_ln1_b=zeros(patch_dim),
        emb_w=init(next(keys), (patch_dim, dim)), emb_b=zeros(dim),
        emb_ln2_g=ones(dim), emb_ln2_b=zeros(dim),
        final_ln_g=ones(dim), final_ln_b=zeros(dim),
        to_pixels_w=init(next(keys), (dim, patch_dim)),
        to_pixels_b=zeros(patch_dim),
        layers=[],
    )
    for _ in range(depth):
        params["layers"].append(dict(
            attn_ln_g=ones(dim), attn_ln_b=zeros(dim),
            w_qkv=init(next(keys), (dim, 3 * inner)),
            w_o=init(next(keys), (inner, dim)), b_o=zeros(dim),
            ff_ln_g=ones(dim), ff_ln_b=zeros(dim),
            w1=init(next(keys), (dim, mlp_dim)), b1=zeros(mlp_dim),
            w2=init(next(keys), (mlp_dim, dim)), b2=zeros(dim),
        ))
    return params


# ----------------------------------------------------------------------------
# SimMIM forward
# ----------------------------------------------------------------------------
def simmim_forward(params, img_tuple, mask_key, *, masking_ratio, patch_size,
                   heads, dim_head):
    img = img_tuple[0]                                  # matches `img = img[0]`
    B, C, H, W = img.shape
    p = patch_size
    gh, gw = H // p, W // p
    N = gh * gw
    patch_dim = p * p * C
    D = params["pos_embedding"].shape[-1]

    # to_patch: 'b c (h p1) (w p2) -> b (h w) (p1 p2 c)'  (pure layout glue)
    patches = img.reshape(B, C, gh, p, gw, p).transpose(0, 2, 4, 3, 5, 1)
    patches = patches.reshape(B, N, patch_dim).astype(jnp.float32)

    pos_emb = params["pos_embedding"][:, 1:N + 1]       # (1, N, D)

    tokens = patch_to_emb(patches.reshape(B * N, patch_dim),
                          params).reshape(B, N, D)

    # random masking (index generation stays in plain JAX, like torch.rand/topk)
    num_masked = int(masking_ratio * N)
    rand = jax.random.uniform(mask_key, (B, N))
    _, masked_indices = lax.top_k(rand, num_masked)     # (B, num_masked)
    batch_range = jnp.arange(B)[:, None]
    int_mask = jnp.zeros((B, N), jnp.int32).at[
        batch_range, masked_indices].set(1)

    tokens = add_pos_and_mask(tokens, pos_emb, params["mask_token"], int_mask)

    # transformer (batch_aggregate / mini_batch / checkpointing flags are
    # training-strategy knobs with no numerical effect on the dense forward)
    x = tokens
    for lp in params["layers"]:
        x = attention_block(x, lp, heads=heads, dim_head=dim_head)  # +residual
        x = feedforward_block(x, lp)                                 # +residual
    x = layernorm_rows(x.reshape(B * N, D), params["final_ln_g"],
                       params["final_ln_b"]).reshape(B, N, D)

    # gather masked positions, project to pixels, L1 reconstruction loss
    encoded_mask = jnp.take_along_axis(x, masked_indices[..., None], axis=1)
    masked_patches = jnp.take_along_axis(patches, masked_indices[..., None],
                                         axis=1)
    total = pred_l1_sum(encoded_mask.reshape(B * num_masked, D),
                        params["to_pixels_w"], params["to_pixels_b"],
                        masked_patches.reshape(B * num_masked, patch_dim))
    # F.l1_loss mean over all elements, then / num_masked (matches reference)
    recon_loss = total / (B * num_masked * patch_dim) / num_masked
    return recon_loss


# ----------------------------------------------------------------------------
if __name__ == "__main__":
    B, C, H, W = 2, 4, 16, 16
    PATCH = 4
    DIM, DEPTH, HEADS, DIM_HEAD, MLP = 32, 2, 2, 16, 64
    N = (H // PATCH) * (W // PATCH)          # 16 patches
    PATCH_DIM = PATCH * PATCH * C            # 64 pixel values per patch

    key = jax.random.PRNGKey(0)
    k_img, k_params, k_mask = jax.random.split(key, 3)
    img = jax.random.normal(k_img, (B, C, H, W), jnp.float32)
    params = init_params(k_params, patch_dim=PATCH_DIM, dim=DIM, depth=DEPTH,
                         heads=HEADS, dim_head=DIM_HEAD, mlp_dim=MLP,
                         num_patches=N)

    loss = simmim_forward(params, (img,), k_mask, masking_ratio=0.5,
                          patch_size=PATCH, heads=HEADS, dim_head=DIM_HEAD)
    loss = jax.block_until_ready(loss)
    assert loss.shape == () and bool(jnp.isfinite(loss))
    print("KERNEL_OK")
</pallas_src>

<mosaic_0001>
module attributes {stable_mosaic.version = 11 : i64} {
  func.func @_embed_kernel(%arg0: i32, %arg1: memref<32x64xf32, #tpu.memory_space<vmem>>, %arg2: memref<1x64xf32, #tpu.memory_space<vmem>>, %arg3: memref<1x64xf32, #tpu.memory_space<vmem>>, %arg4: memref<64x32xbf16, #tpu.memory_space<vmem>>, %arg5: memref<1x32xf32, #tpu.memory_space<vmem>>, %arg6: memref<1x32xf32, #tpu.memory_space<vmem>>, %arg7: memref<1x32xf32, #tpu.memory_space<vmem>>, %arg8: memref<32x32xf32, #tpu.memory_space<vmem>>) attributes {dimension_semantics = [#tpu.dimension_semantics<parallel>], iteration_bounds = array<i64: 1>, scalar_prefetch = 0 : i64, scratch_operands = 0 : i64, tpu.core_type = #tpu.core_type<tc>, window_params = [{transform_indices = @transform_0, window_bounds = array<i64: 32, 64>}, {pipeline_mode = #tpu.pipeline_mode<synchronous>, transform_indices = @transform_1, window_bounds = array<i64: 1, 64>}, {pipeline_mode = #tpu.pipeline_mode<synchronous>, transform_indices = @transform_2, window_bounds = array<i64: 1, 64>}, {pipeline_mode = #tpu.pipeline_mode<synchronous>, transform_indices = @transform_3, window_bounds = array<i64: 64, 32>}, {pipeline_mode = #tpu.pipeline_mode<synchronous>, transform_indices = @transform_4, window_bounds = array<i64: 1, 32>}, {pipeline_mode = #tpu.pipeline_mode<synchronous>, transform_indices = @transform_5, window_bounds = array<i64: 1, 32>}, {pipeline_mode = #tpu.pipeline_mode<synchronous>, transform_indices = @transform_6, window_bounds = array<i64: 1, 32>}, {transform_indices = @transform_7, window_bounds = array<i64: 32, 32>}]} {
    %c0 = arith.constant 0 : index
    %c0_0 = arith.constant 0 : index
    %0 = vector.load %arg1[%c0, %c0_0] : memref<32x64xf32, #tpu.memory_space<vmem>>, vector<32x64xf32>
    %c0_1 = arith.constant 0 : index
    %c0_2 = arith.constant 0 : index
    %1 = vector.load %arg2[%c0_1, %c0_2] : memref<1x64xf32, #tpu.memory_space<vmem>>, vector<1x64xf32>
    %c0_3 = arith.constant 0 : index
    %c0_4 = arith.constant 0 : index
    %2 = vector.load %arg3[%c0_3, %c0_4] : memref<1x64xf32, #tpu.memory_space<vmem>>, vector<1x64xf32>
    %cst = arith.constant dense<0.000000e+00> : vector<32xf32>
    %3 = vector.multi_reduction <add>, %0, %cst [1] : vector<32x64xf32> to vector<32xf32>
    %4 = vector.shape_cast %3 : vector<32xf32> to vector<32x1xf32>
    %cst_5 = arith.constant 6.400000e+01 : f32
    %5 = vector.broadcast %cst_5 : f32 to vector<32x1xf32>
    %6 = arith.divf %4, %5 : vector<32x1xf32>
    %7 = vector.broadcast %6 : vector<32x1xf32> to vector<32x64xf32>
    %8 = arith.subf %0, %7 : vector<32x64xf32>
    %9 = arith.mulf %8, %8 : vector<32x64xf32>
    %cst_6 = arith.constant dense<0.000000e+00> : vector<32xf32>
    %10 = vector.multi_reduction <add>, %9, %cst_6 [1] : vector<32x64xf32> to vector<32xf32>
    %11 = vector.shape_cast %10 : vector<32xf32> to vector<32x1xf32>
    %cst_7 = arith.constant 6.400000e+01 : f32
    %12 = vector.broadcast %cst_7 : f32 to vector<32x1xf32>
    %13 = arith.divf %11, %12 : vector<32x1xf32>
    %14 = vector.broadcast %6 : vector<32x1xf32> to vector<32x64xf32>
    %15 = arith.subf %0, %14 : vector<32x64xf32>
    %cst_8 = arith.constant 9.99999974E-6 : f32
    %16 = vector.broadcast %cst_8 : f32 to vector<32x1xf32>
    %17 = arith.addf %13, %16 : vector<32x1xf32>
    %18 = math.rsqrt %17 : vector<32x1xf32>
    %19 = vector.broadcast %18 : vector<32x1xf32> to vector<32x64xf32>
    %20 = arith.mulf %15, %19 : vector<32x64xf32>
    %21 = vector.broadcast %1 : vector<1x64xf32> to vector<32x64xf32>
    %22 = arith.mulf %20, %21 : vector<32x64xf32>
    %23 = vector.broadcast %2 : vector<1x64xf32> to vector<32x64xf32>
    %24 = arith.addf %22, %23 : vector<32x64xf32>
    %25 = arith.truncf %24 : vector<32x64xf32> to vector<32x64xbf16>
    %c0_9 = arith.constant 0 : index
    %c0_10 = arith.constant 0 : index
    %26 = vector.load %arg4[%c0_9, %c0_10] : memref<64x32xbf16, #tpu.memory_space<vmem>>, vector<64x32xbf16>
    %cst_11 = arith.constant dense<0.000000e+00> : vector<32x32xf32>
    %27 = tpu.matmul %25, %26, %cst_11 {dimension_numbers = #tpu.dot_dimension_numbers<[1], [0], [0], [1], [0, 0, 1, 1], [], []>} : vector<32x64xbf16>, vector<64x32xbf16>, vector<32x32xf32> -> vector<32x32xf32>
    %c0_12 = arith.constant 0 : index
    %c0_13 = arith.constant 0 : index
    %28 = vector.load %arg5[%c0_12, %c0_13] : memref<1x32xf32, #tpu.memory_space<vmem>>, vector<1x32xf32>
    %29 = vector.broadcast %28 : vector<1x32xf32> to vector<32x32xf32>
    %30 = arith.addf %27, %29 : vector<32x32xf32>
    %c0_14 = arith.constant 0 : index
    %c0_15 = arith.constant 0 : index
    %31 = vector.load %arg6[%c0_14, %c0_15] : memref<1x32xf32, #tpu.memory_space<vmem>>, vector<1x32xf32>
    %c0_16 = arith.constant 0 : index
    %c0_17 = arith.constant 0 : index
    %32 = vector.load %arg7[%c0_16, %c0_17] : memref<1x32xf32, #tpu.memory_space<vmem>>, vector<1x32xf32>
    %cst_18 = arith.constant dense<0.000000e+00> : vector<32xf32>
    %33 = vector.multi_reduction <add>, %30, %cst_18 [1] : vector<32x32xf32> to vector<32xf32>
    %34 = vector.shape_cast %33 : vector<32xf32> to vector<32x1xf32>
    %cst_19 = arith.constant 3.200000e+01 : f32
    %35 = vector.broadcast %cst_19 : f32 to vector<32x1xf32>
    %36 = arith.divf %34, %35 : vector<32x1xf32>
    %37 = vector.broadcast %36 : vector<32x1xf32> to vector<32x32xf32>
    %38 = arith.subf %30, %37 : vector<32x32xf32>
    %39 = arith.mulf %38, %38 : vector<32x32xf32>
    %cst_20 = arith.constant dense<0.000000e+00> : vector<32xf32>
    %40 = vector.multi_reduction <add>, %39, %cst_20 [1] : vector<32x32xf32> to vector<32xf32>
    %41 = vector.shape_cast %40 : vector<32xf32> to vector<32x1xf32>
    %cst_21 = arith.constant 3.200000e+01 : f32
    %42 = vector.broadcast %cst_21 : f32 to vector<32x1xf32>
    %43 = arith.divf %41, %42 : vector<32x1xf32>
    %44 = vector.broadcast %36 : vector<32x1xf32> to vector<32x32xf32>
    %45 = arith.subf %30, %44 : vector<32x32xf32>
    %cst_22 = arith.constant 9.99999974E-6 : f32
    %46 = vector.broadcast %cst_22 : f32 to vector<32x1xf32>
    %47 = arith.addf %43, %46 : vector<32x1xf32>
    %48 = math.rsqrt %47 : vector<32x1xf32>
    %49 = vector.broadcast %48 : vector<32x1xf32> to vector<32x32xf32>
    %50 = arith.mulf %45, %49 : vector<32x32xf32>
    %51 = vector.broadcast %31 : vector<1x32xf32> to vector<32x32xf32>
    %52 = arith.mulf %50, %51 : vector<32x32xf32>
    %53 = vector.broadcast %32 : vector<1x32xf32> to vector<32x32xf32>
    %54 = arith.addf %52, %53 : vector<32x32xf32>
    %c0_23 = arith.constant 0 : index
    %c0_24 = arith.constant 0 : index
    %55 = vector.load %arg8[%c0_23, %c0_24] : memref<32x32xf32, #tpu.memory_space<vmem>>, vector<32x32xf32>
    tpu.vector_store %arg8[%c0_23, %c0_24], %54 {strides = array<i32>} : memref<32x32xf32, #tpu.memory_space<vmem>>, vector<32x32xf32>,
    return
  }
  func.func @transform_0(%arg0: i32) -> (i32, i32) {
    %c0_i32 = arith.constant 0 : i32
    %c0_i32_0 = arith.constant 0 : i32
    return %arg0, %c0_i32 : i32, i32
  }
  func.func @transform_1(%arg0: i32) -> (i32, i32) {
    %c0_i32 = arith.constant 0 : i32
    %c0_i32_0 = arith.constant 0 : i32
    %c0_i32_1 = arith.constant 0 : i32
    return %c0_i32, %c0_i32_0 : i32, i32
  }
  func.func @transform_2(%arg0: i32) -> (i32, i32) {
    %c0_i32 = arith.constant 0 : i32
    %c0_i32_0 = arith.constant 0 : i32
    %c0_i32_1 = arith.constant 0 : i32
    return %c0_i32, %c0_i32_0 : i32, i32
  }
  func.func @transform_3(%arg0: i32) -> (i32, i32) {
    %c0_i32 = arith.constant 0 : i32
    %c0_i32_0 = arith.constant 0 : i32
    %c0_i32_1 = arith.constant 0 : i32
    return %c0_i32, %c0_i32_0 : i32, i32
  }
  func.func @transform_4(%arg0: i32) -> (i32, i32) {
    %c0_i32 = arith.constant 0 : i32
    %c0_i32_0 = arith.constant 0 : i32
    %c0_i32_1 = arith.constant 0 : i32
    return %c0_i32, %c0_i32_0 : i32, i32
  }
  func.func @transform_5(%arg0: i32) -> (i32, i32) {
    %c0_i32 = arith.constant 0 : i32
    %c0_i32_0 = arith.constant 0 : i32
    %c0_i32_1 = arith.constant 0 : i32
    return %c0_i32, %c0_i32_0 : i32, i32
  }
  func.func @transform_6(%arg0: i32) -> (i32, i32) {
    %c0_i32 = arith.constant 0 : i32
    %c0_i32_0 = arith.constant 0 : i32
    %c0_i32_1 = arith.constant 0 : i32
    return %c0_i32, %c0_i32_0 : i32, i32
  }
  func.func @transform_7(%arg0: i32) -> (i32, i32) {
    %c0_i32 = arith.constant 0 : i32
    %c0_i32_0 = arith.constant 0 : i32
    return %arg0, %c0_i32 : i32, i32
  }
}

</mosaic_0001>

<llo_original>
// kernel: tpu_custom_call.1
$region0: #{tpu_custom_call.1}
  #allocation0 [shape = 'u32[]', space=smem, size = 0x4, offset = 0x4, fixed_abs, tag = 'smem constant byte address 0x4 - core index']
  #allocation1 [shape = 'u32[72,128]{1,0:T(1,128)}', space=vmem, size = 0x9000, scoped, tag = 'internal scratch']
  %s0 = inlined_call_operand.vmem [shape: f32[32,64], index: 0, kind: input, shape index: {}]
  %s1 = inlined_call_operand.vmem [shape: f32[1,64], index: 1, kind: input, shape index: {}]
  %s2 = inlined_call_operand.vmem [shape: f32[1,64], index: 2, kind: input, shape index: {}]
  %s3 = inlined_call_operand.vmem [shape: bf16[64,32], index: 3, kind: input, shape index: {}]
  %s4 = inlined_call_operand.vmem [shape: f32[1,32], index: 4, kind: input, shape index: {}]
  %s5 = inlined_call_operand.vmem [shape: f32[1,32], index: 5, kind: input, shape index: {}]
  %s6 = inlined_call_operand.vmem [shape: f32[1,32], index: 6, kind: input, shape index: {}]
  %s7 = inlined_call_operand.hbm [shape: f32[32,32], index: 7, kind: output, shape index: {}]
  %s8 = sld [smem:[#allocation0]]
  $region38: #{tpu_custom_call.1} parent=0
    _
  %s10 = ssub.s32 1, %s8
  %s11 = scalar_select 0, %s10, %s8
  $region1: #{tpu_custom_call.1} parent=0
    #allocation2 [shape = 'u8[16384]{0}', space=vmem, size = 0x4000, scoped, tag = 'output window, operand 0, single buffered']
    #allocation3 [shape = 's32[1]{0}', space=sflag, size = 0x4, scoped, tag = 'scoped memory for tpu_custom_call.1']
    %12 = vsyncpa [#allocation3], 0
    // Predicated region
    $region2: #{tpu_custom_call.1} parent=1 // pred_check
      _
    $region3: #{tpu_custom_call.1} parent=1 // pred_check_branch
      %14 = sbr.rel (0) target = $region5
    $region4: #{tpu_custom_call.1} parent=1 // pred_region
      _
    $region5: #{tpu_custom_call.1} parent=1 // pred_fallthru
      _
    // Predicated region
    $region6: #{tpu_custom_call.1} parent=1 // pred_check
      _
    $region7: #{tpu_custom_call.1} parent=1 // pred_check_branch
      %16 = sbr.rel (0) target = $region9
    $region8: #{tpu_custom_call.1} parent=1 // pred_region
      _
    $region9: #{tpu_custom_call.1} parent=1 // pred_fallthru
      _
    // Predicated region
    $region10: #{tpu_custom_call.1} parent=1 // pred_check
      _
    $region11: #{tpu_custom_call.1} parent=1 // pred_check_branch
      %18 = sbr.rel (0) target = $region13
    $region12: #{tpu_custom_call.1} parent=1 // pred_region
      _
    $region13: #{tpu_custom_call.1} parent=1 // pred_fallthru
      _
    // Predicated region
    $region14: #{tpu_custom_call.1} parent=1 // pred_check
      _
    $region15: #{tpu_custom_call.1} parent=1 // pred_check_branch
      %20 = sbr.rel (0) target = $region17
    $region16: #{tpu_custom_call.1} parent=1 // pred_region
      _
    $region17: #{tpu_custom_call.1} parent=1 // pred_fallthru
      _
    // Predicated region
    $region18: #{tpu_custom_call.1} parent=1 // pred_check
      _
    $region19: #{tpu_custom_call.1} parent=1 // pred_check_branch
      %22 = sbr.rel (0) target = $region21
    $region20: #{tpu_custom_call.1} parent=1 // pred_region
      _
    $region21: #{tpu_custom_call.1} parent=1 // pred_fallthru
      _
    // Predicated region
    $region22: #{tpu_custom_call.1} parent=1 // pred_check
      _
    $region23: #{tpu_custom_call.1} parent=1 // pred_check_branch
      %24 = sbr.rel (0) target = $region25
    $region24: #{tpu_custom_call.1} parent=1 // pred_region
      _
    $region25: #{tpu_custom_call.1} parent=1 // pred_fallthru
      _
    // Predicated region
    $region26: #{tpu_custom_call.1} parent=1 // pred_check
      _
    $region27: #{tpu_custom_call.1} parent=1 // pred_check_branch
      %26 = sbr.rel (0) target = $region29
    $region28: #{tpu_custom_call.1} parent=1 // pred_region
      _
    $region29: #{tpu_custom_call.1} parent=1 // pred_fallthru
      _
    %v28 = vld [vmem:[%s0] sm:$0xff]
    %v29 = vld [vmem:[%s0 + $0x8] sm:$0xff]
    %v30 = vld [vmem:[%s0 + $0x10] sm:$0xff]
    %v31 = vld [vmem:[%s0 + $0x18] sm:$0xff]
    %v32 = vld [vmem:[%s1] sm:$0x1]
    %v33 = vld [vmem:[%s2] sm:$0x1]
    %vm34 = vcmask 523264
    %v35 = vsel %vm34, %v28, 0.0
    %36 = vadd.xlane.f32.xlu0 %v35
    %v37 = vpop.xlane.xlu0 %36
    %v38 = vsel %vm34, %v29, 0.0
    %39 = vadd.xlane.f32.xlu0 %v38
    %v40 = vpop.xlane.xlu0 %39
    %v41 = vsel %vm34, %v30, 0.0
    %42 = vadd.xlane.f32.xlu0 %v41
    %v43 = vpop.xlane.xlu0 %42
    %v44 = vsel %vm34, %v31, 0.0
    %45 = vadd.xlane.f32.xlu0 %v44
    %v46 = vpop.xlane.xlu0 %45
    %v47 = vrcp.pop 64.0
    %v48 = vmul.f32 64.0, %v47
    %v49 = vsub.f32 1.0, %v48
    %v50 = vmul.f32 %v47, %v49
    %v51 = vadd.f32 %v47, %v50
    %vm52 = vweird.f32 %v47
    %v53 = vsel %vm52, %v47, %v51
    %v54 = vmul.f32 %v37, %v53
    %v55 = vmul.f32 %v40, %v53
    %v56 = vmul.f32 %v43, %v53
    %v57 = vmul.f32 %v46, %v53
    %v58 = vsub.f32 %v28, %v54
    %v59 = vsub.f32 %v29, %v55
    %v60 = vsub.f32 %v30, %v56
    %v61 = vsub.f32 %v31, %v57
    %v62 = vmul.f32 %v58, %v58
    %v63 = vmul.f32 %v59, %v59
    %v64 = vmul.f32 %v60, %v60
    %v65 = vmul.f32 %v61, %v61
    %v66 = vsel %vm34, %v62, 0.0
    %67 = vadd.xlane.f32.xlu0 %v66
    %v68 = vpop.xlane.xlu0 %67
    %v69 = vsel %vm34, %v63, 0.0
    %70 = vadd.xlane.f32.xlu0 %v69
    %v71 = vpop.xlane.xlu0 %70
    %v72 = vsel %vm34, %v64, 0.0
    %73 = vadd.xlane.f32.xlu0 %v72
    %v74 = vpop.xlane.xlu0 %73
    %v75 = vsel %vm34, %v65, 0.0
    %76 = vadd.xlane.f32.xlu0 %v75
    %v77 = vpop.xlane.xlu0 %76
    %v78 = vmul.f32 %v68, %v53
    %v79 = vmul.f32 %v71, %v53
    %v80 = vmul.f32 %v74, %v53
    %v81 = vmul.f32 %v77, %v53
    %v82 = vadd.f32 %v78, 1e-05
    %v83 = vadd.f32 %v79, 1e-05
    %v84 = vadd.f32 %v80, 1e-05
    %v85 = vadd.f32 %v81, 1e-05
    %v86 = vrsqrt.pop %v82
    %v87 = vmul.f32 %v86, %v82
    %v88 = vmul.f32 %v87, %v86
    %v89 = vmul.f32 0.5, %v88
    %v90 = vsub.f32 1.5, %v89
    %v91 = vmul.f32 %v86, %v90
    %vm92 = vweird.f32 %v82
    %vm93 = vweird.f32 %v86
    %vm94 = vmor %vm92, %vm93
    %v95 = vsel %vm94, %v86, %v91
    %v96 = vrsqrt.pop %v83
    %v97 = vmul.f32 %v96, %v83
    %v98 = vmul.f32 %v97, %v96
    %v99 = vmul.f32 0.5, %v98
    %v100 = vsub.f32 1.5, %v99
    %v101 = vmul.f32 %v96, %v100
    %vm102 = vweird.f32 %v83
    %vm103 = vweird.f32 %v96
    %vm104 = vmor %vm102, %vm103
    %v105 = vsel %vm104, %v96, %v101
    %v106 = vrsqrt.pop %v84
    %v107 = vmul.f32 %v106, %v84
    %v108 = vmul.f32 %v107, %v106
    %v109 = vmul.f32 0.5, %v108
    %v110 = vsub.f32 1.5, %v109
    %v111 = vmul.f32 %v106, %v110
    %vm112 = vweird.f32 %v84
    %vm113 = vweird.f32 %v106
    %vm114 = vmor %vm112, %vm113
    %v115 = vsel %vm114, %v106, %v111
    %v116 = vrsqrt.pop %v85
    %v117 = vmul.f32 %v116, %v85
    %v118 = vmul.f32 %v117, %v116
    %v119 = vmul.f32 0.5, %v118
    %v120 = vsub.f32 1.5, %v119
    %v121 = vmul.f32 %v116, %v120
    %vm122 = vweird.f32 %v85
    %vm123 = vweird.f32 %v116
    %vm124 = vmor %vm122, %vm123
    %v125 = vsel %vm124, %v116, %v121
    %v126 = vmul.f32 %v58, %v95
    %v127 = vmul.f32 %v59, %v105
    %v128 = vmul.f32 %v60, %v115
    %v129 = vmul.f32 %v61, %v125
    %v131 = vperm.slane %v32, 0
    %v133 = vmul.f32 %v126, %v131
    %v134 = vmul.f32 %v127, %v131
    %v135 = vmul.f32 %v128, %v131
    %v136 = vmul.f32 %v129, %v131
    %v138 = vperm.slane %v33, 0
    %v140 = vadd.f32 %v133, %v138
    %v141 = vadd.f32 %v134, %v138
    %v142 = vadd.f32 %v135, %v138
    %v143 = vadd.f32 %v136, %v138
    %v144 = vpack.c.bf16 %v141, %v140
    %v145 = vpack.c.bf16 %v143, %v142
    %v146 = vld [vmem:[%s3] sm:$0xf]
    %v147 = vld [vmem:[%s3 + $0x4] sm:$0xf]
    %v148 = vld [vmem:[%s3 + $0x8] sm:$0xf]
    %v149 = vld [vmem:[%s3 + $0xc] sm:$0xf]
    %v150 = vld [vmem:[%s3 + $0x10] sm:$0xf]
    %v151 = vld [vmem:[%s3 + $0x14] sm:$0xf]
    %v152 = vld [vmem:[%s3 + $0x18] sm:$0xf]
    %v153 = vld [vmem:[%s3 + $0x1c] sm:$0xf]
    %v154 = vld [vmem:[%s4] sm:$0x1]
    %v156 = vperm.slane %v154, 0
    %v166 = vunpack.c.l.b16 %v146
    %v167 = vunpack.c.l.b16 %v147
    %v168 = vunpack.c.l.b16 %v148
    %v169 = vunpack.c.l.b16 %v149
    %v170 = vunpack.c.l.b16 %v150
    %v171 = vunpack.c.l.b16 %v151
    %v172 = vunpack.c.l.b16 %v152
    %v173 = vunpack.c.l.b16 %v153
    %v174 = vpack.c.b16 %v167, %v166
    %v175 = vpack.c.b16 %v169, %v168
    %v176 = vpack.c.b16 %v171, %v170
    %v177 = vpack.c.b16 %v173, %v172
    %v183 = vsel %vm34, %v144, 0
    %v186 = vsel %vm34, %v145, 0
    %188 = vmatpush.bf16.msra.mxu0 0
    %189 = vmatpush.bf16.msra.mxu0 0
    %190 = vmatpush.bf16.msra.mxu0 0
    %191 = vmatpush.bf16.msra.mxu0 0
    %192 = vmatpush.bf16.msra.mxu0 %v177
    %193 = vmatpush.bf16.msra.mxu0 %v176
    %194 = vmatpush.bf16.msra.mxu0 %v175
    %195 = vmatpush.bf16.msra.mxu0 %v174
    %196 = vmatmul.bf16.gmra.mxu0 %v183
    %v197 = vpop.f32.mrf.mxu0
    %v198 = vadd.f32 %v156, %v197
    %v199 = vpop.f32.mrf.mxu0
    %v200 = vadd.f32 %v156, %v199
    %201 = vmatmul.bf16.gmra.mxu0 %v186
    %v202 = vpop.f32.mrf.mxu0
    %v203 = vadd.f32 %v156, %v202
    %v204 = vpop.f32.mrf.mxu0
    %v205 = vadd.f32 %v156, %v204
    %206 = vdwg.mxu0
    %v207 = vld [vmem:[%s5] sm:$0x1]
    %v208 = vld [vmem:[%s6] sm:$0x1]
    %vm209 = vcmask 261120
    %v210 = vsel %vm209, %v198, 0.0
    %211 = vadd.xlane.f32.xlu0 %v210
    %v212 = vpop.xlane.xlu0 %211
    %v213 = vsel %vm209, %v200, 0.0
    %214 = vadd.xlane.f32.xlu0 %v213
    %v215 = vpop.xlane.xlu0 %214
    %v216 = vsel %vm209, %v203, 0.0
    %217 = vadd.xlane.f32.xlu0 %v216
    %v218 = vpop.xlane.xlu0 %217
    %v219 = vsel %vm209, %v205, 0.0
    %220 = vadd.xlane.f32.xlu0 %v219
    %v221 = vpop.xlane.xlu0 %220
    %v222 = vrcp.pop 32.0
    %v223 = vmul.f32 32.0, %v222
    %v224 = vsub.f32 1.0, %v223
    %v225 = vmul.f32 %v222, %v224
    %v226 = vadd.f32 %v222, %v225
    %vm227 = vweird.f32 %v222
    %v228 = vsel %vm227, %v222, %v226
    %v229 = vmul.f32 %v212, %v228
    %v230 = vmul.f32 %v215, %v228
    %v231 = vmul.f32 %v218, %v228
    %v232 = vmul.f32 %v221, %v228
    %v233 = vsub.f32 %v198, %v229
    %v234 = vsub.f32 %v200, %v230
    %v235 = vsub.f32 %v203, %v231
    %v236 = vsub.f32 %v205, %v232
    %v237 = vmul.f32 %v233, %v233
    %v238 = vmul.f32 %v234, %v234
    %v239 = vmul.f32 %v235, %v235
    %v240 = vmul.f32 %v236, %v236
    %v241 = vsel %vm209, %v237, 0.0
    %242 = vadd.xlane.f32.xlu0 %v241
    %v243 = vpop.xlane.xlu0 %242
    %v244 = vsel %vm209, %v238, 0.0
    %245 = vadd.xlane.f32.xlu0 %v244
    %v246 = vpop.xlane.xlu0 %245
    %v247 = vsel %vm209, %v239, 0.0
    %248 = vadd.xlane.f32.xlu0 %v247
    %v249 = vpop.xlane.xlu0 %248
    %v250 = vsel %vm209, %v240, 0.0
    %251 = vadd.xlane.f32.xlu0 %v250
    %v252 = vpop.xlane.xlu0 %251
    %v253 = vmul.f32 %v243, %v228
    %v254 = vmul.f32 %v246, %v228
    %v255 = vmul.f32 %v249, %v228
    %v256 = vmul.f32 %v252, %v228
    %v257 = vadd.f32 %v253, 1e-05
    %v258 = vadd.f32 %v254, 1e-05
    %v259 = vadd.f32 %v255, 1e-05
    %v260 = vadd.f32 %v256, 1e-05
    %v261 = vrsqrt.pop %v257
    %v262 = vmul.f32 %v261, %v257
    %v263 = vmul.f32 %v262, %v261
    %v264 = vmul.f32 0.5, %v263
    %v265 = vsub.f32 1.5, %v264
    %v266 = vmul.f32 %v261, %v265
    %vm267 = vweird.f32 %v257
    %vm268 = vweird.f32 %v261
    %vm269 = vmor %vm267, %vm268
    %v270 = vsel %vm269, %v261, %v266
    %v271 = vrsqrt.pop %v258
    %v272 = vmul.f32 %v271, %v258
    %v273 = vmul.f32 %v272, %v271
    %v274 = vmul.f32 0.5, %v273
    %v275 = vsub.f32 1.5, %v274
    %v276 = vmul.f32 %v271, %v275
    %vm277 = vweird.f32 %v258
    %vm278 = vweird.f32 %v271
    %vm279 = vmor %vm277, %vm278
    %v280 = vsel %vm279, %v271, %v276
    %v281 = vrsqrt.pop %v259
    %v282 = vmul.f32 %v281, %v259
    %v283 = vmul.f32 %v282, %v281
    %v284 = vmul.f32 0.5, %v283
    %v285 = vsub.f32 1.5, %v284
    %v286 = vmul.f32 %v281, %v285
    %vm287 = vweird.f32 %v259
    %vm288 = vweird.f32 %v281
    %vm289 = vmor %vm287, %vm288
    %v290 = vsel %vm289, %v281, %v286
    %v291 = vrsqrt.pop %v260
    %v292 = vmul.f32 %v291, %v260
    %v293 = vmul.f32 %v292, %v291
    %v294 = vmul.f32 0.5, %v293
    %v295 = vsub.f32 1.5, %v294
    %v296 = vmul.f32 %v291, %v295
    %vm297 = vweird.f32 %v260
    %vm298 = vweird.f32 %v291
    %vm299 = vmor %vm297, %vm298
    %v300 = vsel %vm299, %v291, %v296
    %v301 = vmul.f32 %v233, %v270
    %v302 = vmul.f32 %v234, %v280
    %v303 = vmul.f32 %v235, %v290
    %v304 = vmul.f32 %v236, %v300
    %v306 = vperm.slane %v207, 0
    %v308 = vmul.f32 %v301, %v306
    %v309 = vmul.f32 %v302, %v306
    %v310 = vmul.f32 %v303, %v306
    %v311 = vmul.f32 %v304, %v306
    %v313 = vperm.slane %v208, 0
    %v315 = vadd.f32 %v308, %v313
    %v316 = vadd.f32 %v309, %v313
    %v317 = vadd.f32 %v310, %v313
    %v318 = vadd.f32 %v311, %v313
    %319 = vst.msk [vmem:[#allocation2] sm:$0xff] %vm209, %v315
    %320 = vst.msk [vmem:[#allocation2 + $0x8] sm:$0xff] %vm209, %v316
    %321 = vst.msk [vmem:[#allocation2 + $0x10] sm:$0xff] %vm209, %v317
    %322 = vst.msk [vmem:[#allocation2 + $0x18] sm:$0xff] %vm209, %v318
    // Predicated region
    $region30: #{tpu_custom_call.1} parent=1 // pred_check
      _
    $region31: #{tpu_custom_call.1} parent=1 // pred_check_branch
      %324 = sbr.rel (0) target = $region33
    $region32: #{tpu_custom_call.1} parent=1 // pred_region
      %326 = vsyncadd [#allocation3], 0
      %s327 = sshll.u32 [#allocation2], 4
      %s328 = int_to_ptr.vmem [resolvable:$true] %s327
      %s329 = sshll.u32 %s7, 4
      %s330 = int_to_ptr.hbm [resolvable:$true] %s329
      %335 = dma.vmem_to_hbm [thread:$0]  %s328, 512, %s330, [#allocation3], 128, 128, 8
    $region33: #{tpu_custom_call.1} parent=1 // pred_fallthru
      _
    // Predicated region
    $region34: #{tpu_custom_call.1} parent=1 // pred_check
      _
    $region35: #{tpu_custom_call.1} parent=1 // pred_check_branch
      %337 = sbr.rel (0) target = $region37
    $region36: #{tpu_custom_call.1} parent=1 // pred_region
      %339 = dma.done [#allocation3], 512
    $region37: #{tpu_custom_call.1} parent=1 // pred_fallthru
      _
    %340 = vsyncpa [#allocation3], 1

</llo_original>
